<compile_context>
chip_gen: v5e
topology: v5e:2x2
jax: 0.10.0
libtpu: 0.0.40
codegen_flags: <defaults>
</compile_context>

<pallas_src>
import functools

import numpy as np
import jax
import jax.numpy as jnp
from jax.experimental import pallas as pl
from jax.experimental.pallas import tpu as pltpu


def _shift_flat_kernel(x_ref, mask_ref, o_ref, *, roll_amount):
    """x_ref/o_ref blocks are (Bc, L); mask_ref is a resident (1, L) constant."""
    x = x_ref[...]                                   # (Bc, L)
    # Single XLU rotation (pltpu.roll needs a non-negative amount; L - D is the
    # same as rolling by -D).  Wrapped elements land only in the masked region.
    y = x if roll_amount == 0 else pltpu.roll(x, roll_amount, axis=1)
    # One VPU multiply per vreg zeroes the vacated bottom/right band.
    o_ref[...] = y * mask_ref[...]


def _pick_block_rows(m, row_bytes, itemsize, target_bytes=2 << 20):
    """Row-block size Bc for (Bc, L) tiles.

    * Bc is a multiple of the dtype's sublane packing (8 f32 / 16 bf16 /
      32 int8-fp8) or the full row extent M (satisfies the (8,128) rule).
    * Block stays <= ~target_bytes (2 MiB -> ~8 MiB pipeline footprint).
    * Prefers >= 4 grid steps (pipeline ramp-up/down) and an even step count
      (megacore balance on v7x) when the shape allows it.
    The grid uses cdiv, so Bc need not divide M.
    """
    cdiv = lambda a, b: -(-a // b)
    align = max(8, 32 // max(1, itemsize))
    if m <= align:
        return m

    # Largest aligned block that fits the VMEM target.
    bc = max(align, (target_bytes // max(1, row_bytes)) // align * align)
    # Prefer at least 4 grid steps when the problem is big enough.
    bc = min(bc, max(align, ((m - 1) // 3) // align * align))
    # Nudge toward an even step count without shrinking below one sublane tile.
    s = cdiv(m, bc)
    if s % 2 == 1 and s > 1:
        bc_even = max(align, cdiv(cdiv(m, s + 1), align) * align)
        if cdiv(m, bc_even) % 2 == 0:
            bc = bc_even
    return bc


def tensor_shifter(x, shift=(0, 0)):
    """Pallas equivalent of TensorShifter(shift).forward(x). x is NCHW."""
    s0, s1 = int(shift[0]), int(shift[1])
    if s0 > 0 or s1 > 0:
        # TODO(synk): positive shifts raise a shape-mismatch in the original
        # PyTorch module (dest slice clamps to H/W but source has |s| rows),
        # so only non-positive shifts are supported here as well.
        raise ValueError("TensorShifter only supports non-positive shifts.")

    N, C, H, W = x.shape
    k0, k1 = -s0, -s1

    # No-op / fully-shifted-out cases: skip the kernel entirely.
    if k0 == 0 and k1 == 0:
        return x
    if k0 >= H or k1 >= W:
        return jnp.zeros_like(x)

    M, L = N * C, H * W
    itemsize = jnp.dtype(x.dtype).itemsize
    x_flat = x.reshape(M, L)                           # lane-dense flat layout

    # Trace-time constant mask: valid iff row < H - k0 and col < W - k1.
    q = np.arange(L)
    rows, cols = q // W, q % W
    mask_np = ((rows < H - k0) & (cols < W - k1)).astype(np.dtype(x.dtype))
    mask = jnp.asarray(mask_np.reshape(1, L))

    D = k0 * W + k1                                    # uniform flat shift
    roll_amount = (L - D) % L

    bc = _pick_block_rows(M, L * itemsize, itemsize)
    grid = (pl.cdiv(M, bc),)                           # ragged last block OK

    kernel = functools.partial(_shift_flat_kernel, roll_amount=roll_amount)

    out_flat = pl.pallas_call(
        kernel,
        out_shape=jax.ShapeDtypeStruct((M, L), x.dtype),
        grid_spec=pltpu.PrefetchScalarGridSpec(
            num_scalar_prefetch=0,
            grid=grid,
            in_specs=[
                pl.BlockSpec((bc, L), lambda i: (i, 0)),   # x tiles
                pl.BlockSpec((1, L), lambda i: (0, 0)),    # resident mask
            ],
            out_specs=pl.BlockSpec((bc, L), lambda i: (i, 0)),
        ),
        compiler_params=pltpu.CompilerParams(
            dimension_semantics=("parallel",)),
        cost_estimate=pl.CostEstimate(
            flops=0,
            transcendentals=0,
            bytes_accessed=(2 * M * L + L) * itemsize),
    )(x_flat, mask)

    return out_flat.reshape(N, C, H, W)


def _reference(x, shift):
    """Pure-JAX reference reproducing the PyTorch slice-assignment."""
    _, _, H, W = x.shape
    k0, k1 = -shift[0], -shift[1]
    out = jnp.zeros_like(x)
    if H - k0 <= 0 or W - k1 <= 0:
        return out
    return out.at[..., : H - k0, : W - k1].set(x[..., k0:, k1:])


if __name__ == "__main__":
    key = jax.random.PRNGKey(0)

    # Primary test shape (matches the spec-implied NCHW layout).
    x = jax.random.normal(key, (2, 4, 16, 16), dtype=jnp.float32)
    for shift in [(0, 0), (-2, -3), (-5, 0), (0, -7), (-16, -1)]:
        out = jax.block_until_ready(tensor_shifter(x, shift=shift))
        ref = _reference(x, shift)
        assert out.shape == x.shape and out.dtype == x.dtype
        assert jnp.allclose(out, ref), f"mismatch for shift={shift}"

    # Odd N*C (exercises the cdiv grid / ragged last block) and bf16 packing.
    x_odd = jax.random.normal(jax.random.PRNGKey(1), (3, 5, 16, 16),
                              dtype=jnp.float32)
    out = jax.block_until_ready(tensor_shifter(x_odd, shift=(-1, -4)))
    assert jnp.allclose(out, _reference(x_odd, (-1, -4)))

    x_bf = x.astype(jnp.bfloat16)
    out = jax.block_until_ready(tensor_shifter(x_bf, shift=(-3, -2)))
    assert jnp.allclose(out.astype(jnp.float32),
                        _reference(x_bf, (-3, -2)).astype(jnp.float32))

    print("KERNEL_OK")
</pallas_src>

<mosaic_0001>
module attributes {stable_mosaic.version = 11 : i64} {
  func.func @_shift_flat_kernel(%arg0: i32, %arg1: memref<8x256xf32, #tpu.memory_space<vmem>>, %arg2: memref<1x256xf32, #tpu.memory_space<vmem>>, %arg3: memref<8x256xf32, #tpu.memory_space<vmem>>) attributes {dimension_semantics = [#tpu.dimension_semantics<parallel>], iteration_bounds = array<i64: 1>, scalar_prefetch = 0 : i64, scratch_operands = 0 : i64, tpu.core_type = #tpu.core_type<tc>, window_params = [{transform_indices = @transform_0, window_bounds = array<i64: 8, 256>}, {pipeline_mode = #tpu.pipeline_mode<synchronous>, transform_indices = @transform_1, window_bounds = array<i64: 1, 256>}, {transform_indices = @transform_2, window_bounds = array<i64: 8, 256>}]} {
    %c0 = arith.constant 0 : index
    %c0_0 = arith.constant 0 : index
    %0 = vector.load %arg1[%c0, %c0_0] : memref<8x256xf32, #tpu.memory_space<vmem>>, vector<8x256xf32>
    %c221_i32 = arith.constant 221 : i32
    %1 = tpu.dynamic_rotate %0 by %c221_i32 dim 1 : vector<8x256xf32>, i32 -> vector<8x256xf32>
    %c0_1 = arith.constant 0 : index
    %c0_2 = arith.constant 0 : index
    %2 = vector.load %arg2[%c0_1, %c0_2] : memref<1x256xf32, #tpu.memory_space<vmem>>, vector<1x256xf32>
    %3 = vector.broadcast %2 : vector<1x256xf32> to vector<8x256xf32>
    %4 = arith.mulf %1, %3 : vector<8x256xf32>
    %c0_3 = arith.constant 0 : index
    %c0_4 = arith.constant 0 : index
    %5 = vector.load %arg3[%c0_3, %c0_4] : memref<8x256xf32, #tpu.memory_space<vmem>>, vector<8x256xf32>
    tpu.vector_store %arg3[%c0_3, %c0_4], %4 {strides = array<i32>} : memref<8x256xf32, #tpu.memory_space<vmem>>, vector<8x256xf32>,
    return
  }
  func.func @transform_0(%arg0: i32) -> (i32, i32) {
    %c0_i32 = arith.constant 0 : i32
    %c0_i32_0 = arith.constant 0 : i32
    return %arg0, %c0_i32 : i32, i32
  }
  func.func @transform_1(%arg0: i32) -> (i32, i32) {
    %c0_i32 = arith.constant 0 : i32
    %c0_i32_0 = arith.constant 0 : i32
    %c0_i32_1 = arith.constant 0 : i32
    return %c0_i32, %c0_i32_0 : i32, i32
  }
  func.func @transform_2(%arg0: i32) -> (i32, i32) {
    %c0_i32 = arith.constant 0 : i32
    %c0_i32_0 = arith.constant 0 : i32
    return %arg0, %c0_i32 : i32, i32
  }
}

</mosaic_0001>

<llo_original>
// kernel: tpu_custom_call.1
$region0: #{tpu_custom_call.1}
  #allocation0 [shape = 'u32[]', space=smem, size = 0x4, offset = 0x4, fixed_abs, tag = 'smem constant byte address 0x4 - core index']
  #allocation1 [shape = 'u32[72,128]{1,0:T(1,128)}', space=vmem, size = 0x9000, scoped, tag = 'internal scratch']
  %s0 = inlined_call_operand.hbm [shape: f32[8,256], index: 0, kind: input, shape index: {}]
  %s1 = inlined_call_operand.hbm [shape: f32[1,256], index: 1, kind: input, shape index: {}]
  %s2 = inlined_call_operand.hbm [shape: f32[8,256], index: 2, kind: output, shape index: {}]
  %s3 = sld [smem:[#allocation0]]
  $region26: #{tpu_custom_call.1} parent=0
    _
  %s5 = ssub.s32 1, %s3
  %s6 = scalar_select 0, %s5, %s3
  $region1: #{tpu_custom_call.1} parent=0
    #allocation2 [shape = 'u8[8192]{0}', space=vmem, size = 0x2000, scoped, tag = 'input window, operand 0, single buffered']
    #allocation3 [shape = 's32[1]{0}', space=sflag, size = 0x4, scoped, tag = 'scoped memory for tpu_custom_call.1']
    #allocation4 [shape = 's32[1]{0}', space=sflag, size = 0x4, scoped, tag = 'scoped memory for tpu_custom_call.1']
    #allocation5 [shape = 'u8[1024]{0}', space=vmem, size = 0x400, scoped, tag = 'input window, operand 1, single buffered']
    #allocation6 [shape = 's32[1]{0}', space=sflag, size = 0x4, scoped, tag = 'scoped memory for tpu_custom_call.1']
    #allocation7 [shape = 'u8[8192]{0}', space=vmem, size = 0x2000, scoped, tag = 'output window, operand 0, single buffered']
    %7 = vsyncpa [#allocation3], 0
    %8 = vsyncpa [#allocation6], 0
    %9 = vsyncpa [#allocation4], 0
    // Predicated region
    $region2: #{tpu_custom_call.1} parent=1 // pred_check
      _
    $region3: #{tpu_custom_call.1} parent=1 // pred_check_branch
      %11 = sbr.rel (0) target = $region5
    $region4: #{tpu_custom_call.1} parent=1 // pred_region
      %13 = vsyncadd [#allocation3], 0
      %s15 = sshll.u32 %s0, 4
      %s16 = int_to_ptr.hbm [resolvable:$true] %s15
      %s17 = sshll.u32 [#allocation2], 4
      %s18 = int_to_ptr.vmem [resolvable:$true] %s17
      %20 = dma.hbm_to_vmem [thread:$0]  %s16, 256, %s18, [#allocation3]
    $region5: #{tpu_custom_call.1} parent=1 // pred_fallthru
      _
    // Predicated region
    $region6: #{tpu_custom_call.1} parent=1 // pred_check
      _
    $region7: #{tpu_custom_call.1} parent=1 // pred_check_branch
      %22 = sbr.rel (0) target = $region9
    $region8: #{tpu_custom_call.1} parent=1 // pred_region
      %24 = vsyncadd [#allocation6], 0
      %s26 = sshll.u32 %s1, 4
      %s27 = int_to_ptr.hbm [resolvable:$true] %s26
      %s28 = sshll.u32 [#allocation5], 4
      %s29 = int_to_ptr.vmem [resolvable:$true] %s28
      %31 = dma.hbm_to_vmem [thread:$0]  %s27, 32, %s29, [#allocation6]
    $region9: #{tpu_custom_call.1} parent=1 // pred_fallthru
      _
    // Predicated region
    $region10: #{tpu_custom_call.1} parent=1 // pred_check
      _
    $region11: #{tpu_custom_call.1} parent=1 // pred_check_branch
      %33 = sbr.rel (0) target = $region13
    $region12: #{tpu_custom_call.1} parent=1 // pred_region
      %35 = dma.done [#allocation3], 256
    $region13: #{tpu_custom_call.1} parent=1 // pred_fallthru
      _
    // Predicated region
    $region14: #{tpu_custom_call.1} parent=1 // pred_check
      _
    $region15: #{tpu_custom_call.1} parent=1 // pred_check_branch
      %37 = sbr.rel (0) target = $region17
    $region16: #{tpu_custom_call.1} parent=1 // pred_region
      %39 = dma.done [#allocation6], 32
    $region17: #{tpu_custom_call.1} parent=1 // pred_fallthru
      _
    %v40 = vld [vmem:[#allocation2] sm:$0xff]
    %v41 = vld [vmem:[#allocation2 + $0x8] sm:$0xff]
    %42 = vrot.lane.b32.xlu0 %v40, 93
    %v43 = vpop.permute.xlu0 %42
    %44 = vrot.lane.b32.xlu0 %v41, 93
    %v45 = vpop.permute.xlu0 %44
    %v46 = vlaneseq
    %v47 = vand.u32 %v46, 127
    %vm48 = vcmp.lt.s32.totalorder %v47, 93
    %v49 = vsel %vm48, %v43, %v45
    %v50 = vsel %vm48, %v45, %v43
    %v51 = vld [vmem:[#allocation5] sm:$0x3]
    %v53 = vperm.slane %v51, 0
    %v54 = vperm.slane %v51, 1
    %v57 = vmul.f32 %v49, %v53
    %v58 = vmul.f32 %v50, %v54
    %59 = vst [vmem:[#allocation7] sm:$0xff] %v57
    %60 = vst [vmem:[#allocation7 + $0x8] sm:$0xff] %v58
    // Predicated region
    $region18: #{tpu_custom_call.1} parent=1 // pred_check
      _
    $region19: #{tpu_custom_call.1} parent=1 // pred_check_branch
      %62 = sbr.rel (0) target = $region21
    $region20: #{tpu_custom_call.1} parent=1 // pred_region
      %64 = vsyncadd [#allocation4], 0
      %s66 = sshll.u32 [#allocation7], 4
      %s67 = int_to_ptr.vmem [resolvable:$true] %s66
      %s68 = sshll.u32 %s2, 4
      %s69 = int_to_ptr.hbm [resolvable:$true] %s68
      %71 = dma.vmem_to_hbm [thread:$0]  %s67, 256, %s69, [#allocation4]
    $region21: #{tpu_custom_call.1} parent=1 // pred_fallthru
      _
    // Predicated region
    $region22: #{tpu_custom_call.1} parent=1 // pred_check
      _
    $region23: #{tpu_custom_call.1} parent=1 // pred_check_branch
      %73 = sbr.rel (0) target = $region25
    $region24: #{tpu_custom_call.1} parent=1 // pred_region
      %75 = dma.done [#allocation4], 256
    $region25: #{tpu_custom_call.1} parent=1 // pred_fallthru
      _
    %76 = vsyncpa [#allocation3], 1
    %77 = vsyncpa [#allocation6], 1
    %78 = vsyncpa [#allocation4], 1

</llo_original>
